<compile_context>
chip_gen: v7x
topology: tpu7x:2x2x1
jax: 0.10.0
libtpu: 0.0.40
codegen_flags: <defaults>
</compile_context>

<pallas_src>
import functools

import jax
import jax.numpy as jnp
from jax.experimental import pallas as pl
from jax.experimental.pallas import tpu as pltpu


def _round_up(x, m):
    return ((x + m - 1) // m) * m


def _decoder_kernel(z_ref, w1_ref, b1_ref, w2_ref, b2_ref, o_ref, *, use_sigmoid):
    # h = relu(z @ W1 + b1); matmul inputs are whatever dtype the wrapper
    # supplied (bf16 fast path or f32 exact path), accumulation is f32 and the
    # whole elementwise epilogue stays f32.
    h = jnp.dot(z_ref[...], w1_ref[...], preferred_element_type=jnp.float32)
    h = h + b1_ref[...]                      # (tm, H) + (1, H) broadcast
    h = jnp.maximum(h, 0.0)                  # ReLU

    # out = h @ W2 + b2
    out = jnp.dot(h.astype(w2_ref.dtype), w2_ref[...],
                  preferred_element_type=jnp.float32)
    out = out + b2_ref[...]                  # (tm, O) + (1, O) broadcast
    if use_sigmoid:
        out = jax.nn.sigmoid(out)
    o_ref[...] = out.astype(o_ref.dtype)


def prepare_decoder_params(w1, b1, w2, b2, *, matmul_dtype=jnp.bfloat16):
    """One-time parameter prep (hoisted out of the per-call path).

    Casts W1/W2 to the matmul input dtype (bf16 by default) and reshapes the
    biases to (1, dim) float32 for the in-kernel broadcast.  Do this once at
    init / load time and reuse the result for every forward call.
    """
    hidden_dim = w1.shape[1]
    output_dim = w2.shape[1]
    w1_p = w1.astype(matmul_dtype)
    w2_p = w2.astype(matmul_dtype)
    b1_p = jnp.reshape(b1, (1, hidden_dim)).astype(jnp.float32)
    b2_p = jnp.reshape(b2, (1, output_dim)).astype(jnp.float32)
    return w1_p, b1_p, w2_p, b2_p


def decoder_forward(z, w1, b1, w2, b2, *, use_sigmoid=False, block_batch=1024):
    """Pallas implementation of Decoder.forward.

    z:  (B, latent_dim)
    w1: (latent_dim, hidden_dim)  b1: (1, hidden_dim) f32   } from
    w2: (hidden_dim, output_dim)  b2: (1, output_dim) f32   } prepare_decoder_params
    returns (B, output_dim) float32

    The matmul-input dtype is taken from the prepared weights (bf16 default).
    Supplying z already in that dtype avoids the wrapper-side cast pass.
    """
    B, latent_dim = z.shape
    hidden_dim = w1.shape[1]
    output_dim = w2.shape[1]
    matmul_dtype = w1.dtype
    itemsize = jnp.dtype(matmul_dtype).itemsize

    # ---- batch tiling (only axis that is tiled) -----------------------------
    # Adaptive tile so the padded remainder is at most a few rows, tm is a
    # sublane multiple, and (when the batch allows) there are >=2 grid steps so
    # v7x's two TensorCores are both fed (harmless on v5e/v6e).
    B8 = _round_up(B, 8)
    n_blocks = pl.cdiv(B8, block_batch)
    if n_blocks == 1 and B8 >= 512:
        n_blocks = 2
    tm = _round_up(pl.cdiv(B8, n_blocks), 8)
    B_p = tm * n_blocks
    grid = (n_blocks,)

    # ---- activation prep (cast once; pad only the tiny batch remainder) -----
    z_m = z.astype(matmul_dtype) if z.dtype != matmul_dtype else z
    if B_p != B:
        z_m = jnp.pad(z_m, ((0, B_p - B), (0, 0)))

    kernel = functools.partial(_decoder_kernel, use_sigmoid=use_sigmoid)

    # ---- cost estimate for the XLA scheduler --------------------------------
    flops = 2 * B_p * (latent_dim * hidden_dim + hidden_dim * output_dim)
    bytes_accessed = (B_p * latent_dim * itemsize                      # z in
                      + (latent_dim * hidden_dim
                         + hidden_dim * output_dim) * itemsize         # W1, W2
                      + (hidden_dim + output_dim) * 4                  # b1, b2
                      + B_p * output_dim * 4)                          # out
    cost = pl.CostEstimate(
        flops=flops,
        transcendentals=B_p * output_dim if use_sigmoid else 0,
        bytes_accessed=bytes_accessed)

    # ---- VMEM footprint guard (only matters for much larger dims) -----------
    vmem_est = (2 * tm * latent_dim * itemsize            # z (double-buffered)
                + 2 * tm * output_dim * 4                 # out (double-buffered)
                + 2 * (latent_dim * hidden_dim
                       + hidden_dim * output_dim) * itemsize
                + 2 * (hidden_dim + output_dim) * 4
                + tm * hidden_dim * 4)                    # h (Mosaic VMEM temp)
    cp_kwargs = dict(dimension_semantics=("parallel",))
    if vmem_est > 12 * 1024 * 1024:
        cp_kwargs["vmem_limit_bytes"] = min(int(vmem_est * 2), 100 * 1024 * 1024)

    out_padded = pl.pallas_call(
        kernel,
        out_shape=jax.ShapeDtypeStruct((B_p, output_dim), jnp.float32),
        grid=grid,
        in_specs=[
            # z streams through the pipeline in (tm, latent_dim) row tiles;
            # latent_dim is a full-dim block (no K padding).
            pl.BlockSpec((tm, latent_dim), lambda i: (i, 0)),
            # Weights / biases: constant index_map -> fetched once, VMEM-resident.
            pl.BlockSpec((latent_dim, hidden_dim), lambda i: (0, 0)),
            pl.BlockSpec((1, hidden_dim), lambda i: (0, 0)),
            pl.BlockSpec((hidden_dim, output_dim), lambda i: (0, 0)),
            pl.BlockSpec((1, output_dim), lambda i: (0, 0)),
        ],
        out_specs=pl.BlockSpec((tm, output_dim), lambda i: (i, 0)),
        compiler_params=pltpu.CompilerParams(**cp_kwargs),
        cost_estimate=cost,
    )(z_m, w1, b1, w2, b2)

    return out_padded[:B] if B_p != B else out_padded


def init_decoder_params(key, latent_dim, hidden_dim, output_dim):
    """Deterministic parameter init mimicking nn.Linear's U(-1/sqrt(fan_in), ...)."""
    k1, k2, k3, k4 = jax.random.split(key, 4)
    lim1 = 1.0 / jnp.sqrt(latent_dim)
    lim2 = 1.0 / jnp.sqrt(hidden_dim)
    # Stored as (in, out) so the kernel does z @ W (PyTorch stores (out, in)).
    w1 = jax.random.uniform(k1, (latent_dim, hidden_dim), jnp.float32, -lim1, lim1)
    b1 = jax.random.uniform(k2, (hidden_dim,), jnp.float32, -lim1, lim1)
    w2 = jax.random.uniform(k3, (hidden_dim, output_dim), jnp.float32, -lim2, lim2)
    b2 = jax.random.uniform(k4, (output_dim,), jnp.float32, -lim2, lim2)
    return w1, b1, w2, b2


if __name__ == "__main__":
    latent_dim = 10
    hidden_dim = 50
    output_dim = 64
    batch = 8

    key = jax.random.PRNGKey(0)
    kz, kp = jax.random.split(key)
    z = jax.random.normal(kz, (batch, latent_dim), jnp.float32)
    w1, b1, w2, b2 = init_decoder_params(kp, latent_dim, hidden_dim, output_dim)

    # Pure-JAX reference of the same math.
    ref = jnp.maximum(z @ w1 + b1[None, :], 0.0) @ w2 + b2[None, :]

    # --- exact f32 path (bit-faithful to the PyTorch f32 module) -------------
    p32 = prepare_decoder_params(w1, b1, w2, b2, matmul_dtype=jnp.float32)
    out32 = jax.block_until_ready(decoder_forward(z, *p32, use_sigmoid=False))
    assert out32.shape == (batch, output_dim)
    assert jnp.allclose(out32, ref, atol=1e-5, rtol=1e-5)

    out32_sig = jax.block_until_ready(decoder_forward(z, *p32, use_sigmoid=True))
    assert jnp.allclose(out32_sig, jax.nn.sigmoid(ref), atol=1e-5, rtol=1e-5)

    # --- default bf16 MXU-input path (f32 accumulate/epilogue; NOT bit-exact) -
    pbf = prepare_decoder_params(w1, b1, w2, b2)  # bf16 weights by default
    outbf = jax.block_until_ready(decoder_forward(z, *pbf, use_sigmoid=False))
    assert jnp.allclose(outbf, ref, atol=5e-2, rtol=5e-2)

    # --- larger, non-tile-aligned batch: multi-step grid + remainder padding --
    zb = jax.random.normal(kz, (777, latent_dim), jnp.float32)
    refb = jnp.maximum(zb @ w1 + b1[None, :], 0.0) @ w2 + b2[None, :]
    outb = jax.block_until_ready(
        decoder_forward(zb, *pbf, use_sigmoid=True, block_batch=256))
    assert outb.shape == (777, output_dim)
    assert jnp.allclose(outb, jax.nn.sigmoid(refb), atol=5e-2, rtol=5e-2)

    print("KERNEL_OK")
</pallas_src>

<mosaic_0001>
module attributes {stable_mosaic.version = 11 : i64} {
  func.func @_decoder_kernel(%arg0: i32, %arg1: memref<8x10xf32, #tpu.memory_space<vmem>>, %arg2: memref<10x50xf32, #tpu.memory_space<vmem>>, %arg3: memref<1x50xf32, #tpu.memory_space<vmem>>, %arg4: memref<50x64xf32, #tpu.memory_space<vmem>>, %arg5: memref<1x64xf32, #tpu.memory_space<vmem>>, %arg6: memref<8x64xf32, #tpu.memory_space<vmem>>) attributes {dimension_semantics = [#tpu.dimension_semantics<parallel>], iteration_bounds = array<i64: 1>, scalar_prefetch = 0 : i64, scratch_operands = 0 : i64, tpu.core_type = #tpu.core_type<tc>, window_params = [{transform_indices = @transform_0, window_bounds = array<i64: 8, 10>}, {pipeline_mode = #tpu.pipeline_mode<synchronous>, transform_indices = @transform_1, window_bounds = array<i64: 10, 50>}, {pipeline_mode = #tpu.pipeline_mode<synchronous>, transform_indices = @transform_2, window_bounds = array<i64: 1, 50>}, {pipeline_mode = #tpu.pipeline_mode<synchronous>, transform_indices = @transform_3, window_bounds = array<i64: 50, 64>}, {pipeline_mode = #tpu.pipeline_mode<synchronous>, transform_indices = @transform_4, window_bounds = array<i64: 1, 64>}, {transform_indices = @transform_5, window_bounds = array<i64: 8, 64>}]} {
    %c0 = arith.constant 0 : index
    %c0_0 = arith.constant 0 : index
    %0 = vector.load %arg1[%c0, %c0_0] : memref<8x10xf32, #tpu.memory_space<vmem>>, vector<8x10xf32>
    %c0_1 = arith.constant 0 : index
    %c0_2 = arith.constant 0 : index
    %1 = vector.load %arg2[%c0_1, %c0_2] : memref<10x50xf32, #tpu.memory_space<vmem>>, vector<10x50xf32>
    %cst = arith.constant dense<0.000000e+00> : vector<8x50xf32>
    %2 = tpu.matmul %0, %1, %cst {dimension_numbers = #tpu.dot_dimension_numbers<[1], [0], [0], [1], [0, 0, 1, 1], [], []>} : vector<8x10xf32>, vector<10x50xf32>, vector<8x50xf32> -> vector<8x50xf32>
    %c0_3 = arith.constant 0 : index
    %c0_4 = arith.constant 0 : index
    %3 = vector.load %arg3[%c0_3, %c0_4] : memref<1x50xf32, #tpu.memory_space<vmem>>, vector<1x50xf32>
    %4 = vector.broadcast %3 : vector<1x50xf32> to vector<8x50xf32>
    %5 = arith.addf %2, %4 : vector<8x50xf32>
    %cst_5 = arith.constant 0.000000e+00 : f32
    %6 = vector.broadcast %cst_5 : f32 to vector<8x50xf32>
    %7 = arith.maximumf %5, %6 : vector<8x50xf32>
    %c0_6 = arith.constant 0 : index
    %c0_7 = arith.constant 0 : index
    %8 = vector.load %arg4[%c0_6, %c0_7] : memref<50x64xf32, #tpu.memory_space<vmem>>, vector<50x64xf32>
    %cst_8 = arith.constant dense<0.000000e+00> : vector<8x64xf32>
    %9 = tpu.matmul %7, %8, %cst_8 {dimension_numbers = #tpu.dot_dimension_numbers<[1], [0], [0], [1], [0, 0, 1, 1], [], []>} : vector<8x50xf32>, vector<50x64xf32>, vector<8x64xf32> -> vector<8x64xf32>
    %c0_9 = arith.constant 0 : index
    %c0_10 = arith.constant 0 : index
    %10 = vector.load %arg5[%c0_9, %c0_10] : memref<1x64xf32, #tpu.memory_space<vmem>>, vector<1x64xf32>
    %11 = vector.broadcast %10 : vector<1x64xf32> to vector<8x64xf32>
    %12 = arith.addf %9, %11 : vector<8x64xf32>
    %c0_11 = arith.constant 0 : index
    %c0_12 = arith.constant 0 : index
    %13 = vector.load %arg6[%c0_11, %c0_12] : memref<8x64xf32, #tpu.memory_space<vmem>>, vector<8x64xf32>
    tpu.vector_store %arg6[%c0_11, %c0_12], %12 {strides = array<i32>} : memref<8x64xf32, #tpu.memory_space<vmem>>, vector<8x64xf32>,
    return
  }
  func.func @transform_0(%arg0: i32) -> (i32, i32) {
    %c0_i32 = arith.constant 0 : i32
    %c0_i32_0 = arith.constant 0 : i32
    return %arg0, %c0_i32 : i32, i32
  }
  func.func @transform_1(%arg0: i32) -> (i32, i32) {
    %c0_i32 = arith.constant 0 : i32
    %c0_i32_0 = arith.constant 0 : i32
    %c0_i32_1 = arith.constant 0 : i32
    return %c0_i32, %c0_i32_0 : i32, i32
  }
  func.func @transform_2(%arg0: i32) -> (i32, i32) {
    %c0_i32 = arith.constant 0 : i32
    %c0_i32_0 = arith.constant 0 : i32
    %c0_i32_1 = arith.constant 0 : i32
    return %c0_i32, %c0_i32_0 : i32, i32
  }
  func.func @transform_3(%arg0: i32) -> (i32, i32) {
    %c0_i32 = arith.constant 0 : i32
    %c0_i32_0 = arith.constant 0 : i32
    %c0_i32_1 = arith.constant 0 : i32
    return %c0_i32, %c0_i32_0 : i32, i32
  }
  func.func @transform_4(%arg0: i32) -> (i32, i32) {
    %c0_i32 = arith.constant 0 : i32
    %c0_i32_0 = arith.constant 0 : i32
    %c0_i32_1 = arith.constant 0 : i32
    return %c0_i32, %c0_i32_0 : i32, i32
  }
  func.func @transform_5(%arg0: i32) -> (i32, i32) {
    %c0_i32 = arith.constant 0 : i32
    %c0_i32_0 = arith.constant 0 : i32
    return %arg0, %c0_i32 : i32, i32
  }
}

</mosaic_0001>

<llo_original>
// kernel: tpu_custom_call.1
$region0: #{tpu_custom_call.1}
  #allocation0 [shape = 'u32[]', space=smem, size = 0x4, offset = 0x4, fixed_abs, tag = 'smem constant byte address 0x4 - core index']
  #allocation1 [shape = 'u32[144,128]{1,0:T(1,128)}', space=vmem, size = 0x12000, scoped, tag = 'internal scratch']
  %s0 = inlined_call_operand.hbm [shape: f32[8,10], index: 0, kind: input, shape index: {}]
  %s1 = inlined_call_operand.hbm [shape: f32[10,50], index: 1, kind: input, shape index: {}]
  %s2 = inlined_call_operand.vmem [shape: f32[1,50], index: 2, kind: input, shape index: {}]
  %s3 = inlined_call_operand.hbm [shape: f32[50,64], index: 3, kind: input, shape index: {}]
  %s4 = inlined_call_operand.vmem [shape: f32[1,64], index: 4, kind: input, shape index: {}]
  %s5 = inlined_call_operand.hbm [shape: f32[8,64], index: 5, kind: output, shape index: {}]
  %s6 = sld [smem:[#allocation0]]
  $region42: #{tpu_custom_call.1} parent=0
    _
  %s8 = ssub.s32 1, %s6
  %s9 = scalar_select 0, %s8, %s6
  $region1: #{tpu_custom_call.1} parent=0
    #allocation2 [shape = 'u8[4096]{0}', space=vmem, size = 0x1000, scoped, tag = 'input window, operand 0, single buffered']
    #allocation3 [shape = 's32[1]{0}', space=sflag, size = 0x4, scoped, tag = 'scoped memory for tpu_custom_call.1']
    #allocation4 [shape = 's32[1]{0}', space=sflag, size = 0x4, scoped, tag = 'scoped memory for tpu_custom_call.1']
    #allocation5 [shape = 'u8[8192]{0}', space=vmem, size = 0x2000, scoped, tag = 'input window, operand 1, single buffered']
    #allocation6 [shape = 's32[1]{0}', space=sflag, size = 0x4, scoped, tag = 'scoped memory for tpu_custom_call.1']
    #allocation7 [shape = 'u8[28672]{0}', space=vmem, size = 0x7000, scoped, tag = 'input window, operand 3, single buffered']
    #allocation8 [shape = 'u8[4096]{0}', space=vmem, size = 0x1000, scoped, tag = 'output window, operand 0, single buffered']
    %10 = vsyncpa [#allocation3], 0
    %11 = vsyncpa [#allocation6], 0
    %12 = vsyncpa [#allocation4], 0
    // Predicated region
    $region2: #{tpu_custom_call.1} parent=1 // pred_check
      _
    $region3: #{tpu_custom_call.1} parent=1 // pred_check_branch
      %14 = sbr.rel (0) target = $region5
    $region4: #{tpu_custom_call.1} parent=1 // pred_region
      %s16 = ssub.s32 128, 128
      %17 = vsyncadd [#allocation3], %s16
      %s19 = sshll.u32 [#allocation2], 4
      %s20 = int_to_ptr.vmem [resolvable:$true] %s19
      %22 = dma.hbm_to_vmem [thread:$0]  %s0, 128, %s20, [#allocation3]
    $region5: #{tpu_custom_call.1} parent=1 // pred_fallthru
      _
    // Predicated region
    $region6: #{tpu_custom_call.1} parent=1 // pred_check
      _
    $region7: #{tpu_custom_call.1} parent=1 // pred_check_branch
      %24 = sbr.rel (0) target = $region9
    $region8: #{tpu_custom_call.1} parent=1 // pred_region
      %s26 = ssub.s32 256, 256
      %27 = vsyncadd [#allocation6], %s26
      %s28 = sshll.u32 [#allocation5], 4
      %s29 = int_to_ptr.vmem [resolvable:$true] %s28
      %34 = dma.hbm_to_vmem [thread:$0]  %s1, 256, %s29, [#allocation6], 128, 128, 8
    $region9: #{tpu_custom_call.1} parent=1 // pred_fallthru
      _
    // Predicated region
    $region10: #{tpu_custom_call.1} parent=1 // pred_check
      _
    $region11: #{tpu_custom_call.1} parent=1 // pred_check_branch
      %36 = sbr.rel (0) target = $region13
    $region12: #{tpu_custom_call.1} parent=1 // pred_region
      _
    $region13: #{tpu_custom_call.1} parent=1 // pred_fallthru
      _
    // Predicated region
    $region14: #{tpu_custom_call.1} parent=1 // pred_check
      _
    $region15: #{tpu_custom_call.1} parent=1 // pred_check_branch
      %38 = sbr.rel (0) target = $region17
    $region16: #{tpu_custom_call.1} parent=1 // pred_region
      %s40 = ssub.s32 896, 896
      %41 = vsyncadd [#allocation6], %s40
      %s42 = sshll.u32 [#allocation7], 4
      %s43 = int_to_ptr.vmem [resolvable:$true] %s42
      %48 = dma.hbm_to_vmem [thread:$0]  %s3, 896, %s43, [#allocation6], 128, 128, 8
    $region17: #{tpu_custom_call.1} parent=1 // pred_fallthru
      _
    // Predicated region
    $region18: #{tpu_custom_call.1} parent=1 // pred_check
      _
    $region19: #{tpu_custom_call.1} parent=1 // pred_check_branch
      %50 = sbr.rel (0) target = $region21
    $region20: #{tpu_custom_call.1} parent=1 // pred_region
      _
    $region21: #{tpu_custom_call.1} parent=1 // pred_fallthru
      _
    // Predicated region
    $region22: #{tpu_custom_call.1} parent=1 // pred_check
      _
    $region23: #{tpu_custom_call.1} parent=1 // pred_check_branch
      %52 = sbr.rel (0) target = $region25
    $region24: #{tpu_custom_call.1} parent=1 // pred_region
      %53 = dma.done [#allocation3], 128
    $region25: #{tpu_custom_call.1} parent=1 // pred_fallthru
      _
    // Predicated region
    $region26: #{tpu_custom_call.1} parent=1 // pred_check
      _
    $region27: #{tpu_custom_call.1} parent=1 // pred_check_branch
      %55 = sbr.rel (0) target = $region29
    $region28: #{tpu_custom_call.1} parent=1 // pred_region
      %56 = dma.done [#allocation6], 256
    $region29: #{tpu_custom_call.1} parent=1 // pred_fallthru
      _
    // Predicated region
    $region30: #{tpu_custom_call.1} parent=1 // pred_check
      _
    $region31: #{tpu_custom_call.1} parent=1 // pred_check_branch
      %58 = sbr.rel (0) target = $region33
    $region32: #{tpu_custom_call.1} parent=1 // pred_region
      %59 = dma.done [#allocation6], 896
    $region33: #{tpu_custom_call.1} parent=1 // pred_fallthru
      _
    %v60 = vld [vmem:[#allocation2] sm:$0xff]
    %v61 = vld [vmem:[#allocation5] sm:$0xff]
    %v62 = vld [vmem:[#allocation5 + $0x8] sm:$0x3]
    %v63 = vld [vmem:[%s2] sm:$0x1]
    %v65 = vlaneseq
    %v66 = vshrl.u32 %v65, 7
    %v67 = vsub.s32 0, %v66
    %v68 = vrot.slane %v63, %v67
    %vm70 = vcmask 80896
    %v72 = vsel %vm70, %v60, 0
    %vm74 = vcmask 1041408
    %v76 = vsel %vm74, %v62, 0
    %78 = vmatprep.subr.mxu0 0.0
    %79 = vmatpush1.msra.mxu0 %v61
    %80 = vmatprep.subr.mxu0 0.0
    %81 = vmatpush1.msra.mxu0 %v76
    %82 = vmatprep.subr.mxu0 0.0
    %83 = vmatpush1.msra.mxu0 0.0
    %84 = vmatprep.subr.mxu0 0.0
    %85 = vmatpush1.msra.mxu0 0.0
    %86 = vmatprep.subr.mxu0 0.0
    %87 = vmatpush1.msra.mxu0 0.0
    %88 = vmatprep.subr.mxu0 0.0
    %89 = vmatpush1.msra.mxu0 0.0
    %90 = vmatprep.subr.mxu0 0.0
    %91 = vmatpush1.msra.mxu0 0.0
    %92 = vmatprep.subr.mxu0 0.0
    %93 = vmatpush1.msra.mxu0 0.0
    %94 = vmatprep.subr.mxu0 0.0
    %95 = vmatpush1.msra.mxu0 0.0
    %96 = vmatprep.subr.mxu0 0.0
    %97 = vmatpush1.msra.mxu0 0.0
    %98 = vmatprep.subr.mxu0 0.0
    %99 = vmatpush1.msra.mxu0 0.0
    %100 = vmatprep.subr.mxu0 0.0
    %101 = vmatpush1.msra.mxu0 0.0
    %102 = vmatprep.subr.mxu0 0.0
    %103 = vmatpush1.msra.mxu0 0.0
    %104 = vmatprep.subr.mxu0 0.0
    %105 = vmatpush1.msra.mxu0 0.0
    %106 = vmatprep.subr.mxu0 0.0
    %107 = vmatpush1.msra.mxu0 0.0
    %108 = vmatprep.subr.mxu0 0.0
    %109 = vmatpush1.msra.mxu0 0.0
    %110 = vmatprep.subr.mxu0 0.0
    %111 = vmatpush1.msra.mxu0 0.0
    %112 = vmatprep.subr.mxu0 0.0
    %113 = vmatpush1.msra.mxu0 0.0
    %114 = vmatprep.subr.mxu0 0.0
    %115 = vmatpush1.msra.mxu0 0.0
    %116 = vmatprep.subr.mxu0 0.0
    %117 = vmatpush1.msra.mxu0 0.0
    %118 = vmatprep.subr.mxu0 0.0
    %119 = vmatpush1.msra.mxu0 0.0
    %120 = vmatprep.subr.mxu0 0.0
    %121 = vmatpush1.msra.mxu0 0.0
    %122 = vmatprep.subr.mxu0 0.0
    %123 = vmatpush1.msra.mxu0 0.0
    %124 = vmatprep.subr.mxu0 0.0
    %125 = vmatpush1.msra.mxu0 0.0
    %126 = vmatprep.subr.mxu0 0.0
    %127 = vmatpush1.msra.mxu0 0.0
    %128 = vmatprep.subr.mxu0 0.0
    %129 = vmatpush1.msra.mxu0 0.0
    %130 = vmatprep.subr.mxu0 0.0
    %131 = vmatpush1.msra.mxu0 0.0
    %132 = vmatprep.subr.mxu0 0.0
    %133 = vmatpush1.msra.mxu0 0.0
    %134 = vmatprep.subr.mxu0 0.0
    %135 = vmatpush1.msra.mxu0 0.0
    %136 = vmatprep.subr.mxu0 0.0
    %137 = vmatpush1.msra.mxu0 0.0
    %138 = vmatprep.subr.mxu0 0.0
    %139 = vmatpush1.msra.mxu0 0.0
    %140 = vmatprep.subr.mxu0 0.0
    %141 = vmatpush1.msra.mxu0 0.0
    %142 = vmatprep.mubr.f32.mxu0 0.0
    %143 = vmatmul.mubr.f32.gmra.mrb[0].mxu0 %v72
    %v144 = vpop.f32.mrb[0].mxu0
    %v145 = vadd.f32 %v68, %v144
    %v146 = vpop.f32.mrb[0].mxu0
    %147 = vdwg.mxu0
    %v148 = vmax.f32 %v145, 0.0
    %v149 = vld [vmem:[#allocation7] sm:$0xff]
    %v150 = vld [vmem:[#allocation7 + $0x8] sm:$0xff]
    %v151 = vld [vmem:[#allocation7 + $0x10] sm:$0xff]
    %v152 = vld [vmem:[#allocation7 + $0x18] sm:$0xff]
    %v153 = vld [vmem:[#allocation7 + $0x20] sm:$0xff]
    %v154 = vld [vmem:[#allocation7 + $0x28] sm:$0xff]
    %v155 = vld [vmem:[#allocation7 + $0x30] sm:$0x3]
    %v156 = vld [vmem:[%s4] sm:$0x1]
    %v158 = vlaneseq
    %v159 = vshrl.u32 %v158, 7
    %v160 = vsub.s32 0, %v159
    %v161 = vrot.slane %v156, %v160
    %vm163 = vcmask 408576
    %v165 = vsel %vm163, %v148, 0
    %v168 = vsel %vm74, %v155, 0
    %170 = vmatprep.subr.mxu0 0.0
    %171 = vmatpush1.msra.mxu0 %v149
    %172 = vmatprep.subr.mxu0 0.0
    %173 = vmatpush1.msra.mxu0 %v150
    %174 = vmatprep.subr.mxu0 0.0
    %175 = vmatpush1.msra.mxu0 %v151
    %176 = vmatprep.subr.mxu0 0.0
    %177 = vmatpush1.msra.mxu0 %v152
    %178 = vmatprep.subr.mxu0 0.0
    %179 = vmatpush1.msra.mxu0 %v153
    %180 = vmatprep.subr.mxu0 0.0
    %181 = vmatpush1.msra.mxu0 %v154
    %182 = vmatprep.subr.mxu0 0.0
    %183 = vmatpush1.msra.mxu0 %v168
    %184 = vmatprep.subr.mxu0 0.0
    %185 = vmatpush1.msra.mxu0 0.0
    %186 = vmatprep.subr.mxu0 0.0
    %187 = vmatpush1.msra.mxu0 0.0
    %188 = vmatprep.subr.mxu0 0.0
    %189 = vmatpush1.msra.mxu0 0.0
    %190 = vmatprep.subr.mxu0 0.0
    %191 = vmatpush1.msra.mxu0 0.0
    %192 = vmatprep.subr.mxu0 0.0
    %193 = vmatpush1.msra.mxu0 0.0
    %194 = vmatprep.subr.mxu0 0.0
    %195 = vmatpush1.msra.mxu0 0.0
    %196 = vmatprep.subr.mxu0 0.0
    %197 = vmatpush1.msra.mxu0 0.0
    %198 = vmatprep.subr.mxu0 0.0
    %199 = vmatpush1.msra.mxu0 0.0
    %200 = vmatprep.subr.mxu0 0.0
    %201 = vmatpush1.msra.mxu0 0.0
    %202 = vmatprep.subr.mxu0 0.0
    %203 = vmatpush1.msra.mxu0 0.0
    %204 = vmatprep.subr.mxu0 0.0
    %205 = vmatpush1.msra.mxu0 0.0
    %206 = vmatprep.subr.mxu0 0.0
    %207 = vmatpush1.msra.mxu0 0.0
    %208 = vmatprep.subr.mxu0 0.0
    %209 = vmatpush1.msra.mxu0 0.0
    %210 = vmatprep.subr.mxu0 0.0
    %211 = vmatpush1.msra.mxu0 0.0
    %212 = vmatprep.subr.mxu0 0.0
    %213 = vmatpush1.msra.mxu0 0.0
    %214 = vmatprep.subr.mxu0 0.0
    %215 = vmatpush1.msra.mxu0 0.0
    %216 = vmatprep.subr.mxu0 0.0
    %217 = vmatpush1.msra.mxu0 0.0
    %218 = vmatprep.subr.mxu0 0.0
    %219 = vmatpush1.msra.mxu0 0.0
    %220 = vmatprep.subr.mxu0 0.0
    %221 = vmatpush1.msra.mxu0 0.0
    %222 = vmatprep.subr.mxu0 0.0
    %223 = vmatpush1.msra.mxu0 0.0
    %224 = vmatprep.subr.mxu0 0.0
    %225 = vmatpush1.msra.mxu0 0.0
    %226 = vmatprep.subr.mxu0 0.0
    %227 = vmatpush1.msra.mxu0 0.0
    %228 = vmatprep.subr.mxu0 0.0
    %229 = vmatpush1.msra.mxu0 0.0
    %230 = vmatprep.subr.mxu0 0.0
    %231 = vmatpush1.msra.mxu0 0.0
    %232 = vmatprep.subr.mxu0 0.0
    %233 = vmatpush1.msra.mxu0 0.0
    %234 = vmatprep.mubr.f32.mxu0 0.0
    %235 = vmatmul.mubr.f32.gmra.mrb[0].mxu0 %v165
    %v236 = vpop.f32.mrb[0].mxu0
    %v237 = vadd.f32 %v161, %v236
    %v238 = vpop.f32.mrb[0].mxu0
    %239 = vdwg.mxu0
    %vm240 = vcmask 523264
    %241 = vst.msk [vmem:[#allocation8] sm:$0xff] %vm240, %v237
    // Predicated region
    $region34: #{tpu_custom_call.1} parent=1 // pred_check
      _
    $region35: #{tpu_custom_call.1} parent=1 // pred_check_branch
      %243 = sbr.rel (0) target = $region37
    $region36: #{tpu_custom_call.1} parent=1 // pred_region
      %s245 = ssub.s32 128, 128
      %246 = vsyncadd [#allocation4], %s245
      %s248 = sshll.u32 [#allocation8], 4
      %s249 = int_to_ptr.vmem [resolvable:$true] %s248
      %251 = dma.vmem_to_hbm [thread:$0]  %s249, 128, %s5, [#allocation4]
    $region37: #{tpu_custom_call.1} parent=1 // pred_fallthru
      _
    // Predicated region
    $region38: #{tpu_custom_call.1} parent=1 // pred_check
      _
    $region39: #{tpu_custom_call.1} parent=1 // pred_check_branch
      %253 = sbr.rel (0) target = $region41
    $region40: #{tpu_custom_call.1} parent=1 // pred_region
      %254 = dma.done [#allocation4], 128
    $region41: #{tpu_custom_call.1} parent=1 // pred_fallthru
      _
    %255 = vsyncpa [#allocation3], 1
    %256 = vsyncpa [#allocation6], 1
    %257 = vsyncpa [#allocation4], 1

</llo_original>
